<compile_context>
chip_gen: v7x
topology: tpu7x:2x2x1
jax: 0.10.0
libtpu: 0.0.40
codegen_flags: <defaults>
</compile_context>

<pallas_src>
import functools
import math

import jax
import jax.numpy as jnp
from jax.experimental import pallas as pl
from jax.experimental.pallas import tpu as pltpu


def _round_up(a: int, b: int) -> int:
    return ((a + b - 1) // b) * b


def _rmsnorm_kernel(x_ref, w_ref, o_ref, *, eps):
    # x_ref: (tile_rows, D), w_ref: (1, D), o_ref: (tile_rows, D)
    x = x_ref[...]
    xf = x.astype(jnp.float32)
    # mean of squares over the hidden (lane) axis
    ms = jnp.mean(xf * xf, axis=-1, keepdims=True)
    inv = jax.lax.rsqrt(ms + eps)                 # EUP rsqrt
    # torch: (x.float() * rsqrt(...)).type_as(x)
    normed = (xf * inv).astype(x.dtype)
    # torch: weight * normed  (dtype promotion weight x normed)
    o_ref[...] = (w_ref[...] * normed).astype(o_ref.dtype)


def _tpu_caps():
    """Best-effort (vmem_capacity_bytes, tensorcores_per_chip)."""
    vmem_cap = 128 << 20
    try:
        vmem_cap = int(pltpu.get_tpu_info().vmem_capacity_bytes)
    except Exception:
        pass
    kind = ""
    try:
        kind = jax.devices()[0].device_kind.lower()
    except Exception:
        pass
    # v7x: 64 MiB VMEM per TensorCore, 2 TensorCores per chip.
    num_tc = 2 if ("7" in kind or vmem_cap <= (64 << 20)) else 1
    return vmem_cap, num_tc


def rmsnorm(x, weight, eps: float, *, tile_rows: int | None = None,
            cast_weight_to_x_dtype: bool = False):
    """RMSNorm over the last axis of x. x: (..., D); weight: (D,)."""
    orig_shape = x.shape
    D = orig_shape[-1]
    rows = math.prod(orig_shape[:-1]) if len(orig_shape) > 1 else 1

    if cast_weight_to_x_dtype:
        # Optional bandwidth lever: keeps out_dtype == x.dtype (e.g. bf16).
        weight = weight.astype(x.dtype)
    out_dtype = jnp.promote_types(weight.dtype, x.dtype)  # matches torch promotion

    itemsize_x = jnp.dtype(x.dtype).itemsize
    itemsize_o = jnp.dtype(out_dtype).itemsize
    itemsize_w = jnp.dtype(weight.dtype).itemsize
    # sublane packing: 8 rows (f32), 16 (bf16/f16), 32 (int8/fp8)
    pack = max(8, 32 // itemsize_x)

    vmem_cap, num_tc = _tpu_caps()
    # Generation-aware budgets: ~half of capacity for live tiles, ~3/4 as the
    # scoped limit (64 MiB / 96 MiB on 128 MiB parts, 32 MiB / 48 MiB on v7x).
    vmem_budget = min(vmem_cap // 2, 64 << 20)
    vmem_limit = min((vmem_cap * 3) // 4, 96 << 20)
    row_cap = 1024 if vmem_cap >= (96 << 20) else 512

    if tile_rows is None:
        # live VMEM ~= 2x double-buffered input tile + 2x output tile
        # + 2x the (8, D) weight buffer + ~2 MiB Mosaic internal scratch.
        fixed_bytes = 2 * 8 * D * itemsize_w + (2 << 20)
        per_row_bytes = 2 * D * itemsize_x + 2 * D * itemsize_o
        budget_rows = max(pack, (vmem_budget - fixed_bytes) // max(per_row_bytes, 1))
        # D-aware floor: keep per-step DMA >= ~2 MiB so the ~0.35 us/step
        # grid overhead is amortized even for small hidden dims.
        min_dma_rows = -(-(2 << 20) // max(D * itemsize_x, 1))
        tile_rows = min(budget_rows, max(row_cap, min_dma_rows))

    # Block shape must keep the sublane axis pack-aligned; never exceed the
    # (pack-rounded) row count.
    tile_rows = max(pack, (tile_rows // pack) * pack)
    tile_rows = min(tile_rows, _round_up(rows, pack))

    grid_n = pl.cdiv(rows, tile_rows)
    # v7x only: with 2 TensorCores, keep small grids even so both cores work.
    if num_tc == 2 and grid_n < 8 and grid_n % 2 == 1 and rows >= 2 * pack:
        target = grid_n + 1
        tile_rows = max(pack, _round_up(-(-rows // target), pack))
        grid_n = pl.cdiv(rows, tile_rows)

    x2 = x.reshape(rows, D)
    w2 = weight.reshape(1, D)

    # NOTE: for production shapes keep D a multiple of 128 so stores stay
    # lane-dense (D=32 below is demo-only and wastes 3/4 of each store).
    out = pl.pallas_call(
        functools.partial(_rmsnorm_kernel, eps=eps),
        out_shape=jax.ShapeDtypeStruct((rows, D), out_dtype),
        grid_spec=pltpu.PrefetchScalarGridSpec(
            num_scalar_prefetch=0,
            grid=(grid_n,),
            in_specs=[
                pl.BlockSpec((tile_rows, D), lambda i: (i, 0)),
                pl.BlockSpec((1, D), lambda i: (0, 0)),  # weight resident in VMEM
            ],
            out_specs=pl.BlockSpec((tile_rows, D), lambda i: (i, 0)),
        ),
        compiler_params=pltpu.CompilerParams(
            dimension_semantics=("parallel",),
            vmem_limit_bytes=int(vmem_limit),
        ),
    )(x2, w2)

    return out.reshape(orig_shape[:-1] + (D,))


if __name__ == "__main__":
    key = jax.random.PRNGKey(0)
    B, S, D = 2, 8, 32
    eps = 1e-5

    x = jax.random.normal(key, (B, S, D), dtype=jnp.float32)
    # deterministic parameter init matching nn.Parameter(torch.ones(dim))
    weight = jnp.ones((D,), dtype=jnp.float32)

    y = rmsnorm(x, weight, eps)
    y = jax.block_until_ready(y)

    # reference check (plain JAX, same formula as the torch module)
    xf = x.astype(jnp.float32)
    ref = weight * (xf * jax.lax.rsqrt(
        jnp.mean(xf * xf, axis=-1, keepdims=True) + eps)).astype(x.dtype)
    assert y.shape == ref.shape and y.dtype == ref.dtype
    assert jnp.allclose(y, ref, atol=1e-5, rtol=1e-5)

    print("KERNEL_OK")
</pallas_src>

<mosaic_0001>
module attributes {stable_mosaic.version = 11 : i64} {
  func.func @_rmsnorm_kernel(%arg0: i32, %arg1: memref<16x32xf32, #tpu.memory_space<vmem>>, %arg2: memref<1x32xf32, #tpu.memory_space<vmem>>, %arg3: memref<16x32xf32, #tpu.memory_space<vmem>>) attributes {dimension_semantics = [#tpu.dimension_semantics<parallel>], iteration_bounds = array<i64: 1>, scalar_prefetch = 0 : i64, scratch_operands = 0 : i64, tpu.core_type = #tpu.core_type<tc>, window_params = [{transform_indices = @transform_0, window_bounds = array<i64: 16, 32>}, {pipeline_mode = #tpu.pipeline_mode<synchronous>, transform_indices = @transform_1, window_bounds = array<i64: 1, 32>}, {transform_indices = @transform_2, window_bounds = array<i64: 16, 32>}]} {
    %c0 = arith.constant 0 : index
    %c0_0 = arith.constant 0 : index
    %0 = vector.load %arg1[%c0, %c0_0] : memref<16x32xf32, #tpu.memory_space<vmem>>, vector<16x32xf32>
    %1 = arith.mulf %0, %0 : vector<16x32xf32>
    %cst = arith.constant dense<0.000000e+00> : vector<16xf32>
    %2 = vector.multi_reduction <add>, %1, %cst [1] : vector<16x32xf32> to vector<16xf32>
    %3 = vector.shape_cast %2 : vector<16xf32> to vector<16x1xf32>
    %cst_1 = arith.constant 3.200000e+01 : f32
    %4 = vector.broadcast %cst_1 : f32 to vector<16x1xf32>
    %5 = arith.divf %3, %4 : vector<16x1xf32>
    %cst_2 = arith.constant 9.99999974E-6 : f32
    %6 = vector.broadcast %cst_2 : f32 to vector<16x1xf32>
    %7 = arith.addf %5, %6 : vector<16x1xf32>
    %8 = math.rsqrt %7 : vector<16x1xf32>
    %9 = vector.broadcast %8 : vector<16x1xf32> to vector<16x32xf32>
    %10 = arith.mulf %0, %9 : vector<16x32xf32>
    %c0_3 = arith.constant 0 : index
    %c0_4 = arith.constant 0 : index
    %11 = vector.load %arg2[%c0_3, %c0_4] : memref<1x32xf32, #tpu.memory_space<vmem>>, vector<1x32xf32>
    %12 = vector.broadcast %11 : vector<1x32xf32> to vector<16x32xf32>
    %13 = arith.mulf %12, %10 : vector<16x32xf32>
    %c0_5 = arith.constant 0 : index
    %c0_6 = arith.constant 0 : index
    %14 = vector.load %arg3[%c0_5, %c0_6] : memref<16x32xf32, #tpu.memory_space<vmem>>, vector<16x32xf32>
    tpu.vector_store %arg3[%c0_5, %c0_6], %13 {strides = array<i32>} : memref<16x32xf32, #tpu.memory_space<vmem>>, vector<16x32xf32>,
    return
  }
  func.func @transform_0(%arg0: i32) -> (i32, i32) {
    %c0_i32 = arith.constant 0 : i32
    %c0_i32_0 = arith.constant 0 : i32
    return %arg0, %c0_i32 : i32, i32
  }
  func.func @transform_1(%arg0: i32) -> (i32, i32) {
    %c0_i32 = arith.constant 0 : i32
    %c0_i32_0 = arith.constant 0 : i32
    %c0_i32_1 = arith.constant 0 : i32
    return %c0_i32, %c0_i32_0 : i32, i32
  }
  func.func @transform_2(%arg0: i32) -> (i32, i32) {
    %c0_i32 = arith.constant 0 : i32
    %c0_i32_0 = arith.constant 0 : i32
    return %arg0, %c0_i32 : i32, i32
  }
}

</mosaic_0001>

<llo_original>
// kernel: tpu_custom_call.1
$region0: #{tpu_custom_call.1}
  #allocation0 [shape = 'u32[]', space=smem, size = 0x4, offset = 0x4, fixed_abs, tag = 'smem constant byte address 0x4 - core index']
  #allocation1 [shape = 'u32[144,128]{1,0:T(1,128)}', space=vmem, size = 0x12000, scoped, tag = 'internal scratch']
  %s0 = inlined_call_operand.hbm [shape: f32[16,32], index: 0, kind: input, shape index: {}]
  %s1 = inlined_call_operand.hbm [shape: f32[1,32], index: 1, kind: input, shape index: {}]
  %s2 = inlined_call_operand.hbm [shape: f32[16,32], index: 2, kind: output, shape index: {}]
  %s3 = sld [smem:[#allocation0]]
  $region26: #{tpu_custom_call.1} parent=0
    _
  %s5 = ssub.s32 1, %s3
  %s6 = scalar_select 0, %s5, %s3
  $region1: #{tpu_custom_call.1} parent=0
    #allocation2 [shape = 'u8[8192]{0}', space=vmem, size = 0x2000, scoped, tag = 'input window, operand 0, single buffered']
    #allocation3 [shape = 's32[1]{0}', space=sflag, size = 0x4, scoped, tag = 'scoped memory for tpu_custom_call.1']
    #allocation4 [shape = 's32[1]{0}', space=sflag, size = 0x4, scoped, tag = 'scoped memory for tpu_custom_call.1']
    #allocation5 [shape = 'u8[512]{0}', space=vmem, size = 0x400, scoped, tag = 'input window, operand 1, single buffered']
    #allocation6 [shape = 's32[1]{0}', space=sflag, size = 0x4, scoped, tag = 'scoped memory for tpu_custom_call.1']
    #allocation7 [shape = 'u8[8192]{0}', space=vmem, size = 0x2000, scoped, tag = 'output window, operand 0, single buffered']
    %7 = vsyncpa [#allocation3], 0
    %8 = vsyncpa [#allocation6], 0
    %9 = vsyncpa [#allocation4], 0
    // Predicated region
    $region2: #{tpu_custom_call.1} parent=1 // pred_check
      _
    $region3: #{tpu_custom_call.1} parent=1 // pred_check_branch
      %11 = sbr.rel (0) target = $region5
    $region4: #{tpu_custom_call.1} parent=1 // pred_region
      %s13 = ssub.s32 256, 256
      %14 = vsyncadd [#allocation3], %s13
      %s15 = sshll.u32 [#allocation2], 4
      %s16 = int_to_ptr.vmem [resolvable:$true] %s15
      %21 = dma.hbm_to_vmem [thread:$0]  %s0, 256, %s16, [#allocation3], 128, 128, 8
    $region5: #{tpu_custom_call.1} parent=1 // pred_fallthru
      _
    // Predicated region
    $region6: #{tpu_custom_call.1} parent=1 // pred_check
      _
    $region7: #{tpu_custom_call.1} parent=1 // pred_check_branch
      %23 = sbr.rel (0) target = $region9
    $region8: #{tpu_custom_call.1} parent=1 // pred_region
      %s25 = ssub.s32 16, 16
      %26 = vsyncadd [#allocation6], %s25
      %s28 = sshll.u32 [#allocation5], 4
      %s29 = int_to_ptr.vmem [resolvable:$true] %s28
      %31 = dma.hbm_to_vmem [thread:$0]  %s1, 16, %s29, [#allocation6]
    $region9: #{tpu_custom_call.1} parent=1 // pred_fallthru
      _
    // Predicated region
    $region10: #{tpu_custom_call.1} parent=1 // pred_check
      _
    $region11: #{tpu_custom_call.1} parent=1 // pred_check_branch
      %33 = sbr.rel (0) target = $region13
    $region12: #{tpu_custom_call.1} parent=1 // pred_region
      %34 = dma.done [#allocation3], 256
    $region13: #{tpu_custom_call.1} parent=1 // pred_fallthru
      _
    // Predicated region
    $region14: #{tpu_custom_call.1} parent=1 // pred_check
      _
    $region15: #{tpu_custom_call.1} parent=1 // pred_check_branch
      %36 = sbr.rel (0) target = $region17
    $region16: #{tpu_custom_call.1} parent=1 // pred_region
      %37 = dma.done [#allocation6], 16
    $region17: #{tpu_custom_call.1} parent=1 // pred_fallthru
      _
    %v38 = vld [vmem:[#allocation2] sm:$0xff]
    %v39 = vld [vmem:[#allocation2 + $0x8] sm:$0xff]
    %v40 = vmul.f32 %v38, %v38
    %v41 = vmul.f32 %v39, %v39
    %vm42 = vcmask 261120
    %v43 = vsel %vm42, %v40, 0.0
    %44 = vadd.xlane.f32.xlu0 %v43
    %v45 = vpop.xlane.xlu0 %44
    %v46 = vsel %vm42, %v41, 0.0
    %47 = vadd.xlane.f32.xlu0 %v46
    %v48 = vpop.xlane.xlu0 %47
    %v49 = vrcp.pop 32.0
    %v50 = vmul.f32 %v45, %v49
    %v51 = vmul.f32 %v48, %v49
    %v52 = vadd.f32 %v50, 1e-05
    %v53 = vadd.f32 %v51, 1e-05
    %v54 = vrsqrt.pop %v52
    %v55 = vrsqrt.pop %v53
    %v56 = vmul.f32 %v38, %v54
    %v57 = vmul.f32 %v39, %v55
    %v58 = vld [vmem:[#allocation5] sm:$0x1]
    %v60 = vlaneseq
    %v61 = vshrl.u32 %v60, 7
    %v62 = vsub.s32 0, %v61
    %v63 = vrot.slane %v58, %v62
    %v65 = vmul.f32 %v63, %v56
    %v66 = vmul.f32 %v63, %v57
    %67 = vst.msk [vmem:[#allocation7] sm:$0xff] %vm42, %v65
    %68 = vst.msk [vmem:[#allocation7 + $0x8] sm:$0xff] %vm42, %v66
    // Predicated region
    $region18: #{tpu_custom_call.1} parent=1 // pred_check
      _
    $region19: #{tpu_custom_call.1} parent=1 // pred_check_branch
      %70 = sbr.rel (0) target = $region21
    $region20: #{tpu_custom_call.1} parent=1 // pred_region
      %s72 = ssub.s32 256, 256
      %73 = vsyncadd [#allocation4], %s72
      %s74 = sshll.u32 [#allocation7], 4
      %s75 = int_to_ptr.vmem [resolvable:$true] %s74
      %80 = dma.vmem_to_hbm [thread:$0]  %s75, 256, %s2, [#allocation4], 128, 128, 8
    $region21: #{tpu_custom_call.1} parent=1 // pred_fallthru
      _
    // Predicated region
    $region22: #{tpu_custom_call.1} parent=1 // pred_check
      _
    $region23: #{tpu_custom_call.1} parent=1 // pred_check_branch
      %82 = sbr.rel (0) target = $region25
    $region24: #{tpu_custom_call.1} parent=1 // pred_region
      %83 = dma.done [#allocation4], 256
    $region25: #{tpu_custom_call.1} parent=1 // pred_fallthru
      _
    %84 = vsyncpa [#allocation3], 1
    %85 = vsyncpa [#allocation6], 1
    %86 = vsyncpa [#allocation4], 1

</llo_original>
